<compile_context>
chip_gen: v6e
topology: v6e:2x2x1
jax: 0.10.0
libtpu: 0.0.40
codegen_flags: <defaults>
</compile_context>

<pallas_src>
import math
import functools

import jax
import jax.numpy as jnp
from jax import lax
from jax.experimental import pallas as pl
from jax.experimental.pallas import tpu as pltpu


_GOLDEN = 0x9E3779B9


def _fmix32(h):
    """One murmur3 32-bit finalizer round (uint32 in/out) — plenty for dropout."""
    h = h ^ (h >> 16)
    h = h * jnp.uint32(0x85EBCA6B)
    h = h ^ (h >> 13)
    h = h * jnp.uint32(0xC2B2AE35)
    h = h ^ (h >> 16)
    return h


def _pos_enc_kernel(seed_ref, x_ref, pe_ref, o_ref, *,
                    p, training, bb, tl, d, seq_len, d_shift, use_hw_prng):
    x = x_ref[...]            # (bb, tl, d)
    pe = pe_ref[...]          # (1,  tl, d) -> broadcasts over the batch rows
    y = x + pe

    if training and p > 0.0:
        l = pl.program_id(0)          # L-tile index
        b = pl.program_id(1)          # batch-tile index (innermost grid axis)

        if use_hw_prng:
            # Hardware PRNG: ~1 op/vreg.  Mask depends on tiling (fine for
            # dropout).  Seed uniquely per grid step.
            pltpu.prng_seed(seed_ref[0], l, b)
            bits = pltpu.bitcast(pltpu.prng_random_bits((bb, tl, d)),
                                 jnp.uint32)
        else:
            # Stateless counter hash keyed on the global flat element index:
            # mask is identical for any tiling / megacore split.
            # NOTE: index wraps mod 2^32, so masks would repeat if
            # B*L*D >= 2^32 elements (not a practical concern here).
            row = lax.broadcasted_iota(jnp.int32, (bb, tl, d), 1).astype(jnp.uint32)
            col = lax.broadcasted_iota(jnp.int32, (bb, tl, d), 2).astype(jnp.uint32)
            if bb > 1:
                bi = lax.broadcasted_iota(jnp.int32, (bb, tl, d), 0).astype(jnp.uint32)
                row = bi * jnp.uint32(seq_len) + row
            # scalar part of the flat index for this tile (shift+add only)
            base = (b * (bb * seq_len) + l * tl).astype(jnp.uint32)
            flat = base + row
            if d_shift is not None:
                flat = (flat << d_shift) + col        # d is a power of two
            else:
                flat = flat * jnp.uint32(d) + col
            seed = seed_ref[0].astype(jnp.uint32)
            bits = _fmix32(flat + seed * jnp.uint32(_GOLDEN))

        # Integer-domain keep test: keep with probability (1 - p).
        thresh = jnp.uint32(min(int(p * 4294967296.0), 4294967295))
        keep = bits >= thresh
        scale = jnp.float32(1.0 / (1.0 - p))
        # Fused scale-into-select: one select + one mul, no zeros vreg.
        y = y * jnp.where(keep, scale, jnp.float32(0.0))

    o_ref[...] = y.astype(o_ref.dtype)


def make_pe_table(max_len: int, d_model: int = 256) -> jnp.ndarray:
    """Builds the (1, max_len, d_model) sinusoidal table (same as torch init)."""
    position = jnp.arange(max_len, dtype=jnp.float32)[:, None]              # (L, 1)
    div_term = jnp.exp(jnp.arange(0, d_model, 2, dtype=jnp.float32)
                       * (-math.log(10000.0) / d_model))                    # (D/2,)
    pe = jnp.zeros((max_len, d_model), dtype=jnp.float32)
    pe = pe.at[:, 0::2].set(jnp.sin(position * div_term))
    pe = pe.at[:, 1::2].set(jnp.cos(position * div_term))
    return pe[None, :, :]                                                   # (1, L, D)


def _pick_l_tile(L: int, max_tile: int = 1024):
    """Returns (tl, pad): L-tile size and host-side padding of L.

    tl is either the full L (short sequences) or a multiple of 8 that divides
    L; it never exceeds max_tile for long L, so the per-buffer tile stays well
    under v7x's 64 MiB VMEM.  If no suitable divisor exists, L is padded.
    """
    if L <= max_tile:
        return L, 0
    best = 0
    for tl in range(8, max_tile + 1, 8):
        if L % tl == 0:
            best = tl
    if best:
        return best, 0
    tl = 512
    return tl, (-L) % tl


def _pick_b_tile(B: int, tl: int, d: int, itemsize: int,
                 target_bytes: int = 1 << 20) -> int:
    """Largest divisor of B keeping the (Bb, tl, d) tile near ~1 MiB."""
    bb_max = max(1, target_bytes // (tl * d * itemsize))
    best = 1
    for bb in range(1, min(B, bb_max) + 1):
        if B % bb == 0:
            best = bb
    return best


def positional_encoding(x: jnp.ndarray,
                        pe: jnp.ndarray,
                        *,
                        p: float = 0.1,
                        training: bool = True,
                        seed: int = 0,
                        use_hw_prng: bool = False) -> jnp.ndarray:
    """x: (B, L, D); pe: (1, L, D)."""
    B, L, D = x.shape
    assert pe.shape == (1, L, D)
    assert 0.0 <= p < 1.0
    itemsize = jnp.dtype(x.dtype).itemsize

    tl, pad = _pick_l_tile(L)
    if pad:
        x = jnp.pad(x, ((0, 0), (0, pad), (0, 0)))
        pe = jnp.pad(pe, ((0, 0), (0, pad), (0, 0)))
    Lp = L + pad
    num_l = Lp // tl
    bb = _pick_b_tile(B, tl, D, itemsize)
    num_b = B // bb

    d_shift = (D.bit_length() - 1) if (D & (D - 1)) == 0 else None

    kernel = functools.partial(
        _pos_enc_kernel, p=p, training=training, bb=bb, tl=tl, d=D,
        seq_len=Lp, d_shift=d_shift, use_hw_prng=use_hw_prng)
    seed_arr = jnp.array([seed], dtype=jnp.int32)

    # Mem-bound streaming op: read x, read pe once per L-tile, write y.
    flops = (14 if (training and p > 0.0) else 1) * B * Lp * D
    bytes_accessed = itemsize * 2 * B * Lp * D + 4 * Lp * D

    # Right-sized VMEM: (x + out) double-buffered at (bb,tl,D) + pe at
    # (1,tl,D) double-buffered + slack.
    tile_bytes = tl * D * itemsize
    vmem_bytes = 2 * (2 * bb + 1) * tile_bytes + (2 << 20)
    vmem_bytes = int(max(vmem_bytes, 4 << 20))

    out = pl.pallas_call(
        kernel,
        out_shape=jax.ShapeDtypeStruct((B, Lp, D), x.dtype),
        grid_spec=pltpu.PrefetchScalarGridSpec(
            num_scalar_prefetch=1,
            # (L_tiles, B_tiles) with batch innermost: pe block index (0,l,0)
            # stays constant across the inner loop, so each pe tile is DMA'd
            # once per L tile.  The (usually longer) L-tile axis leads, which
            # keeps megacore sharding balanced on v7x even when B is small.
            grid=(num_l, num_b),
            in_specs=[
                pl.BlockSpec((bb, tl, D), lambda l, b, seed: (b, l, 0)),   # x
                pl.BlockSpec((1, tl, D), lambda l, b, seed: (0, l, 0)),    # pe
            ],
            out_specs=pl.BlockSpec((bb, tl, D), lambda l, b, seed: (b, l, 0)),
        ),
        compiler_params=pltpu.CompilerParams(
            # Stateless per-element PRNG => no cross-step carry; safe to
            # shard across both TensorCores on v7x.
            dimension_semantics=("parallel", "parallel"),
            vmem_limit_bytes=vmem_bytes,
        ),
        cost_estimate=pl.CostEstimate(flops=flops, transcendentals=0,
                                      bytes_accessed=bytes_accessed),
    )(seed_arr, x, pe)

    if pad:
        out = out[:, :L, :]
    return out


if __name__ == "__main__":
    # Small shapes consistent with the module: d_model fixed at 256,
    # instantiate with max_len=8, batch=2.
    B, L, D = 2, 8, 256
    key = jax.random.PRNGKey(0)
    x = jax.random.normal(key, (B, L, D), dtype=jnp.float32)
    pe = make_pe_table(L, D)

    # Eval-mode (dropout = identity): exact check against pure-JAX reference.
    out_eval = jax.block_until_ready(positional_encoding(x, pe, training=False))
    ref = x + pe
    assert jnp.allclose(out_eval, ref, atol=1e-6), "eval-mode mismatch"

    # Training-mode (in-kernel dropout, p=0.1, deterministic seed).
    out_train = jax.block_until_ready(
        positional_encoding(x, pe, training=True, seed=1234))
    assert out_train.shape == (B, L, D)
    # Surviving elements must be (x+pe)/(1-p); dropped ones must be exactly 0.
    scaled = ref / (1.0 - 0.1)
    ok = jnp.logical_or(jnp.isclose(out_train, scaled, atol=1e-5, rtol=1e-5),
                        out_train == 0.0)
    assert bool(jnp.all(ok)), "train-mode dropout semantics violated"
    frac_dropped = float(jnp.mean((out_train == 0.0).astype(jnp.float32)))
    assert 0.0 < frac_dropped < 0.5, f"suspicious drop fraction {frac_dropped}"

    print("KERNEL_OK")
</pallas_src>

<mosaic_0001>
module attributes {stable_mosaic.version = 11 : i64} {
  func.func @_pos_enc_kernel(%arg0: i32, %arg1: i32, %arg2: memref<1xi32, #tpu.memory_space<smem>>, %arg3: memref<2x8x256xf32, #tpu.memory_space<vmem>>, %arg4: memref<1x8x256xf32, #tpu.memory_space<vmem>>, %arg5: memref<2x8x256xf32, #tpu.memory_space<vmem>>) attributes {dimension_semantics = [#tpu.dimension_semantics<parallel>, #tpu.dimension_semantics<parallel>], iteration_bounds = array<i64: 1, 1>, scalar_prefetch = 1 : i64, scratch_operands = 0 : i64, tpu.core_type = #tpu.core_type<tc>, window_params = [{transform_indices = @transform_0, window_bounds = array<i64: 2, 8, 256>}, {transform_indices = @transform_1, window_bounds = array<i64: 1, 8, 256>}, {transform_indices = @transform_2, window_bounds = array<i64: 2, 8, 256>}]} {
    %c0 = arith.constant 0 : index
    %c0_0 = arith.constant 0 : index
    %c0_1 = arith.constant 0 : index
    %0 = vector.load %arg3[%c0, %c0_0, %c0_1] : memref<2x8x256xf32, #tpu.memory_space<vmem>>, vector<2x8x256xf32>
    %c0_2 = arith.constant 0 : index
    %c0_3 = arith.constant 0 : index
    %c0_4 = arith.constant 0 : index
    %1 = vector.load %arg4[%c0_2, %c0_3, %c0_4] : memref<1x8x256xf32, #tpu.memory_space<vmem>>, vector<1x8x256xf32>
    %2 = vector.broadcast %1 : vector<1x8x256xf32> to vector<2x8x256xf32>
    %3 = arith.addf %0, %2 : vector<2x8x256xf32>
    %c0_5 = arith.constant 0 : index
    %c0_6 = arith.constant 0 : index
    %c0_7 = arith.constant 0 : index
    %4 = vector.load %arg5[%c0_5, %c0_6, %c0_7] : memref<2x8x256xf32, #tpu.memory_space<vmem>>, vector<2x8x256xf32>
    tpu.vector_store %arg5[%c0_5, %c0_6, %c0_7], %3 {strides = array<i32>} : memref<2x8x256xf32, #tpu.memory_space<vmem>>, vector<2x8x256xf32>,
    return
  }
  func.func @transform_0(%arg0: i32, %arg1: i32, %arg2: memref<1xi32, #tpu.memory_space<smem>>) -> (i32, i32, i32) {
    %c0_i32 = arith.constant 0 : i32
    %c0_i32_0 = arith.constant 0 : i32
    return %arg1, %arg0, %c0_i32 : i32, i32, i32
  }
  func.func @transform_1(%arg0: i32, %arg1: i32, %arg2: memref<1xi32, #tpu.memory_space<smem>>) -> (i32, i32, i32) {
    %c0_i32 = arith.constant 0 : i32
    %c0_i32_0 = arith.constant 0 : i32
    %c0_i32_1 = arith.constant 0 : i32
    return %c0_i32, %arg0, %c0_i32_0 : i32, i32, i32
  }
  func.func @transform_2(%arg0: i32, %arg1: i32, %arg2: memref<1xi32, #tpu.memory_space<smem>>) -> (i32, i32, i32) {
    %c0_i32 = arith.constant 0 : i32
    %c0_i32_0 = arith.constant 0 : i32
    return %arg1, %arg0, %c0_i32 : i32, i32, i32
  }
}

</mosaic_0001>

<llo_original>
// kernel: tpu_custom_call.1
$region0: #{tpu_custom_call.1}
  #allocation0 [shape = 'u32[]', space=smem, size = 0x4, offset = 0x4, fixed_abs, tag = 'smem constant byte address 0x4 - core index']
  #allocation1 [shape = 'u32[144,128]{1,0:T(1,128)}', space=vmem, size = 0x12000, scoped, tag = 'internal scratch']
  #allocation2 [shape = 's32[1]{0}', space=sflag, size = 0x4, scoped, tag = 'scoped memory for tpu_custom_call.1']
  #allocation3 [shape = 's32[1]{0:T(128)S(6)}', space=smem, size = 0x200, scoped, tag = 'prefetched SMEM operand 0']
  %s0 = inlined_call_operand.<no memory space> [shape: s32[1], index: 0, kind: input, shape index: {}]
  %s1 = inlined_call_operand.hbm [shape: f32[2,8,256], index: 1, kind: input, shape index: {}]
  %s2 = inlined_call_operand.hbm [shape: f32[1,8,256], index: 2, kind: input, shape index: {}]
  %s3 = inlined_call_operand.hbm [shape: f32[2,8,256], index: 3, kind: output, shape index: {}]
  %s4 = sld [smem:[#allocation0]]
  $region26: #{tpu_custom_call.1} parent=0
    _
  %s6 = ssub.s32 1, %s4
  %s7 = scalar_select 0, %s6, %s4
  %8 = sst [smem:[#allocation3]] %s0
  $region1: #{tpu_custom_call.1} parent=0
    #allocation4 [shape = 'u8[16384]{0}', space=vmem, size = 0x4000, scoped, tag = 'input window, operand 1, single buffered']
    #allocation5 [shape = 's32[1]{0}', space=sflag, size = 0x4, scoped, tag = 'scoped memory for tpu_custom_call.1']
    #allocation6 [shape = 's32[1]{0}', space=sflag, size = 0x4, scoped, tag = 'scoped memory for tpu_custom_call.1']
    #allocation7 [shape = 'u8[8192]{0}', space=vmem, size = 0x2000, scoped, tag = 'input window, operand 2, single buffered']
    #allocation8 [shape = 's32[1]{0}', space=sflag, size = 0x4, scoped, tag = 'scoped memory for tpu_custom_call.1']
    #allocation9 [shape = 'u8[16384]{0}', space=vmem, size = 0x4000, scoped, tag = 'output window, operand 0, single buffered']
    %9 = vsyncpa [#allocation5], 0
    %10 = vsyncpa [#allocation8], 0
    %11 = vsyncpa [#allocation6], 0
    // Predicated region
    $region2: #{tpu_custom_call.1} parent=1 // pred_check
      _
    $region3: #{tpu_custom_call.1} parent=1 // pred_check_branch
      %13 = sbr.rel (0) target = $region5
    $region4: #{tpu_custom_call.1} parent=1 // pred_region
      %s15 = ssub.s32 512, 512
      %16 = vsyncadd [#allocation5], %s15
      %s17 = sshll.u32 [#allocation4], 4
      %s18 = int_to_ptr.vmem [resolvable:$true] %s17
      %23 = dma.hbm_to_vmem [thread:$0]  %s1, 512, %s18, [#allocation5], 256, 256, 16
    $region5: #{tpu_custom_call.1} parent=1 // pred_fallthru
      _
    // Predicated region
    $region6: #{tpu_custom_call.1} parent=1 // pred_check
      _
    $region7: #{tpu_custom_call.1} parent=1 // pred_check_branch
      %25 = sbr.rel (0) target = $region9
    $region8: #{tpu_custom_call.1} parent=1 // pred_region
      %s27 = ssub.s32 256, 256
      %28 = vsyncadd [#allocation8], %s27
      %s30 = sshll.u32 [#allocation7], 4
      %s31 = int_to_ptr.vmem [resolvable:$true] %s30
      %33 = dma.hbm_to_vmem [thread:$0]  %s2, 256, %s31, [#allocation8]
    $region9: #{tpu_custom_call.1} parent=1 // pred_fallthru
      _
    // Predicated region
    $region10: #{tpu_custom_call.1} parent=1 // pred_check
      _
    $region11: #{tpu_custom_call.1} parent=1 // pred_check_branch
      %35 = sbr.rel (0) target = $region13
    $region12: #{tpu_custom_call.1} parent=1 // pred_region
      %36 = dma.done [#allocation5], 512
    $region13: #{tpu_custom_call.1} parent=1 // pred_fallthru
      _
    // Predicated region
    $region14: #{tpu_custom_call.1} parent=1 // pred_check
      _
    $region15: #{tpu_custom_call.1} parent=1 // pred_check_branch
      %38 = sbr.rel (0) target = $region17
    $region16: #{tpu_custom_call.1} parent=1 // pred_region
      %39 = dma.done [#allocation8], 256
    $region17: #{tpu_custom_call.1} parent=1 // pred_fallthru
      _
    %v40 = vld [vmem:[#allocation4] sm:$0xff]
    %v41 = vld [vmem:[#allocation4 + $0x8] sm:$0xff]
    %v42 = vld [vmem:[#allocation4 + $0x10] sm:$0xff]
    %v43 = vld [vmem:[#allocation4 + $0x18] sm:$0xff]
    %v44 = vld [vmem:[#allocation7] sm:$0xff]
    %v45 = vld [vmem:[#allocation7 + $0x8] sm:$0xff]
    %v46 = vadd.f32 %v40, %v44
    %v47 = vadd.f32 %v41, %v45
    %v48 = vadd.f32 %v42, %v44
    %v49 = vadd.f32 %v43, %v45
    %50 = vst [vmem:[#allocation9] sm:$0xff] %v46
    %51 = vst [vmem:[#allocation9 + $0x8] sm:$0xff] %v47
    %52 = vst [vmem:[#allocation9 + $0x10] sm:$0xff] %v48
    %53 = vst [vmem:[#allocation9 + $0x18] sm:$0xff] %v49
    // Predicated region
    $region18: #{tpu_custom_call.1} parent=1 // pred_check
      _
    $region19: #{tpu_custom_call.1} parent=1 // pred_check_branch
      %55 = sbr.rel (0) target = $region21
    $region20: #{tpu_custom_call.1} parent=1 // pred_region
      %s57 = ssub.s32 512, 512
      %58 = vsyncadd [#allocation6], %s57
      %s59 = sshll.u32 [#allocation9], 4
      %s60 = int_to_ptr.vmem [resolvable:$true] %s59
      %65 = dma.vmem_to_hbm [thread:$0]  %s60, 512, %s3, [#allocation6], 256, 256, 16
    $region21: #{tpu_custom_call.1} parent=1 // pred_fallthru
      _
    // Predicated region
    $region22: #{tpu_custom_call.1} parent=1 // pred_check
      _
    $region23: #{tpu_custom_call.1} parent=1 // pred_check_branch
      %67 = sbr.rel (0) target = $region25
    $region24: #{tpu_custom_call.1} parent=1 // pred_region
      %68 = dma.done [#allocation6], 512
    $region25: #{tpu_custom_call.1} parent=1 // pred_fallthru
      _
    %69 = vsyncpa [#allocation5], 1
    %70 = vsyncpa [#allocation8], 1
    %71 = vsyncpa [#allocation6], 1

</llo_original>
